<compile_context>
chip_gen: v7x
topology: tpu7x:2x2x1
jax: 0.10.0
libtpu: 0.0.40
codegen_flags: <defaults>
</compile_context>

<pallas_src>
import functools
import math

import jax
import jax.numpy as jnp
import numpy as np
from jax.experimental import pallas as pl
from jax.experimental.pallas import tpu as pltpu


def _rope_kernel(ids_ref, w_ref, cs_ref, out_ref):
    """Hot path (MXU-free).

    ids_ref : (tr, F)      f32  folded positions (F = fold * n_axes)
    w_ref   : (F,  RW)     f32  omega table at full output width (RW = fold*4*Dh)
    cs_ref  : (2,  RW)     f32  row 0: cos mask {0,1}; row 1: sin mask {0,-1,+1}
    out_ref : (tr, RW)     f32  final row-major [c,-s,s,c, ...] layout
    """
    n_cols = w_ref.shape[0]
    # angle via broadcast FMAs on the VPU (each output lane gets exactly one
    # nonzero omega contribution, so the accumulation is exact f32).
    ang = ids_ref[:, 0:1] * w_ref[0:1, :]
    for c in range(1, n_cols):
        ang = ang + ids_ref[:, c : c + 1] * w_ref[c : c + 1, :]
    cmask = cs_ref[0:1, :]
    smask = cs_ref[1:2, :]
    # Exact 0/±1 lane select: [cos, -sin, sin, cos] per frequency.
    out_ref[...] = cmask * jnp.cos(ang) + smask * jnp.sin(ang)


def _build_constants(axes_dim, theta, fold):
    """Compile-time constants: full-width omega table W and the cos/sin masks."""
    n_axes = len(axes_dim)
    dh = sum(axes_dim) // 2
    width = 4 * dh
    row_w = fold * width

    # Per-axis omegas placed at their global (concatenated) frequency slots.
    omega = np.zeros((n_axes, dh), dtype=np.float64)
    off = 0
    for a, d in enumerate(axes_dim):
        assert d % 2 == 0
        scale = np.arange(0, d, 2, dtype=np.float64) / d
        omega[a, off : off + d // 2] = 1.0 / (float(theta) ** scale)
        off += d // 2

    # W[j*n_axes + a, j*width + 4k + t] = omega[a, k]  (t = 0..3, token-block j)
    w = np.zeros((fold * n_axes, row_w), dtype=np.float64)
    for j in range(fold):
        for a in range(n_axes):
            w[j * n_axes + a, j * width : (j + 1) * width] = np.repeat(omega[a], 4)

    # lane%4: 0 -> cos, 1 -> -sin, 2 -> sin, 3 -> cos
    lane = np.arange(row_w) % 4
    cmask = ((lane == 0) | (lane == 3)).astype(np.float32)
    smask = np.where(lane == 1, -1.0, np.where(lane == 2, 1.0, 0.0)).astype(np.float32)
    cs = np.stack([cmask, smask], axis=0)

    return jnp.asarray(w, jnp.float32), jnp.asarray(cs, jnp.float32)


def _round_up(x, n):
    return ((x + n - 1) // n) * x.__class__(1) * n // n * n if False else ((x + n - 1) // n) * n


def _pick_row_tile(mf):
    """Sublane-aligned row tile; >=2 grid tiles when possible (v7x megacore),
    capped at 512 rows (amortizes ~0.35 us/step grid overhead, modest VMEM)."""
    if mf <= 8:
        return 8
    half = _round_up(pl.cdiv(mf, 2), 8)
    return max(8, min(512, half))


@functools.partial(jax.jit, static_argnames=("axes_dim", "theta"))
def embed_nd(ids, *, axes_dim, theta):
    """ids: (B, N, n_axes) positions -> (B, 1, N, Dh, 2, 2) float32."""
    B, N, n_axes = ids.shape
    assert n_axes == len(axes_dim)
    dh = sum(axes_dim) // 2
    width = 4 * dh
    m = B * N

    # Token fold making each output row a multiple of 128 lanes (unmasked vst).
    # Only applied when it divides B*N exactly (no output pad/slice) and is
    # small (bounds the zero-block FMA waste); Flux (Dh=64 -> width 256) => 1.
    fold = 128 // math.gcd(width, 128)
    if fold > 8 or m % fold != 0:
        fold = 1
    row_w = fold * width
    mf = m // fold

    w_mat, cs_mask = _build_constants(axes_dim, theta, fold)

    # Row-major regrouping of positions: (B, N, n_axes) -> (mf, fold*n_axes). Free.
    ids_rows = ids.reshape(mf, fold * n_axes).astype(jnp.float32)

    tr = _pick_row_tile(mf)
    grid = (pl.cdiv(mf, tr),)  # partial last block handled by Pallas masking

    cost = pl.CostEstimate(
        flops=mf * row_w * (2 * fold * n_axes + 3),
        transcendentals=2 * mf * row_w,
        bytes_accessed=mf * fold * n_axes * 4
        + mf * row_w * 4
        + int(w_mat.size + cs_mask.size) * 4,
    )

    out_rows = pl.pallas_call(
        _rope_kernel,
        out_shape=jax.ShapeDtypeStruct((mf, row_w), jnp.float32),
        grid_spec=pltpu.PrefetchScalarGridSpec(
            num_scalar_prefetch=0,
            grid=grid,
            in_specs=[
                pl.BlockSpec((tr, fold * n_axes), lambda i: (i, 0)),
                pl.BlockSpec(w_mat.shape, lambda i: (0, 0)),   # tiny constant
                pl.BlockSpec(cs_mask.shape, lambda i: (0, 0)),  # tiny constant
            ],
            out_specs=pl.BlockSpec((tr, row_w), lambda i: (i, 0)),
        ),
        compiler_params=pltpu.CompilerParams(
            dimension_semantics=("parallel",)  # v7x: shards row tiles over TCs
        ),
        cost_estimate=cost,
    )(ids_rows, w_mat, cs_mask)

    # Row-major identical bytes -> free reshapes, no slicing, no extra HBM pass.
    out = out_rows.reshape(B, N, dh, 2, 2)  # [[cos,-sin],[sin,cos]] already in place
    return out[:, None]  # (B, 1, N, Dh, 2, 2)


def _embed_nd_ref(ids, axes_dim, theta):
    """Pure-JAX reference mirroring the PyTorch module."""
    n_axes = ids.shape[-1]
    embs = []
    for i in range(n_axes):
        d = axes_dim[i]
        pos = ids[..., i].astype(jnp.float32)
        scale = jnp.arange(0, d, 2, dtype=jnp.float32) / d
        omega = 1.0 / (theta ** scale)
        ang = jnp.einsum("...n,d->...nd", pos, omega)
        out = jnp.stack(
            [jnp.cos(ang), -jnp.sin(ang), jnp.sin(ang), jnp.cos(ang)], axis=-1
        )
        out = out.reshape(*out.shape[:-1], 2, 2)
        embs.append(out)
    emb = jnp.concatenate(embs, axis=-3)
    return emb[:, None]


if __name__ == "__main__":
    # Module config (deterministic, in-script): dim = sum(axes_dim) = 32
    axes_dim = (8, 8, 16)
    theta = 10000
    B, N = 2, 8
    n_axes = len(axes_dim)

    key = jax.random.PRNGKey(0)
    # Flux-style ids: integer-valued positions stored as floats.
    ids = jax.random.randint(key, (B, N, n_axes), 0, 64).astype(jnp.float32)

    out = embed_nd(ids, axes_dim=axes_dim, theta=theta)
    out = jax.block_until_ready(out)

    ref = _embed_nd_ref(ids, axes_dim, theta)
    assert out.shape == (B, 1, N, sum(axes_dim) // 2, 2, 2), out.shape
    assert out.dtype == jnp.float32
    np.testing.assert_allclose(np.asarray(out), np.asarray(ref), atol=1e-5, rtol=1e-5)

    print("KERNEL_OK")
</pallas_src>

<mosaic_0001>
module attributes {stable_mosaic.version = 11 : i64} {
  func.func @_rope_kernel(%arg0: i32, %arg1: memref<8x6xf32, #tpu.memory_space<vmem>>, %arg2: memref<6x128xf32, #tpu.memory_space<vmem>>, %arg3: memref<2x128xf32, #tpu.memory_space<vmem>>, %arg4: memref<8x128xf32, #tpu.memory_space<vmem>>) attributes {dimension_semantics = [#tpu.dimension_semantics<parallel>], iteration_bounds = array<i64: 1>, scalar_prefetch = 0 : i64, scratch_operands = 0 : i64, tpu.core_type = #tpu.core_type<tc>, window_params = [{transform_indices = @transform_0, window_bounds = array<i64: 8, 6>}, {pipeline_mode = #tpu.pipeline_mode<synchronous>, transform_indices = @transform_1, window_bounds = array<i64: 6, 128>}, {pipeline_mode = #tpu.pipeline_mode<synchronous>, transform_indices = @transform_2, window_bounds = array<i64: 2, 128>}, {transform_indices = @transform_3, window_bounds = array<i64: 8, 128>}]} {
    %c0 = arith.constant 0 : index
    %c0_0 = arith.constant 0 : index
    %0 = vector.load %arg1[%c0, %c0_0] : memref<8x6xf32, #tpu.memory_space<vmem>>, vector<8x1xf32>
    %c0_1 = arith.constant 0 : index
    %c0_2 = arith.constant 0 : index
    %1 = vector.load %arg2[%c0_1, %c0_2] : memref<6x128xf32, #tpu.memory_space<vmem>>, vector<1x128xf32>
    %2 = vector.broadcast %0 : vector<8x1xf32> to vector<8x128xf32>
    %3 = vector.broadcast %1 : vector<1x128xf32> to vector<8x128xf32>
    %4 = arith.mulf %2, %3 : vector<8x128xf32>
    %c0_3 = arith.constant 0 : index
    %c1 = arith.constant 1 : index
    %5 = vector.load %arg1[%c0_3, %c1] : memref<8x6xf32, #tpu.memory_space<vmem>>, vector<8x1xf32>
    %c1_4 = arith.constant 1 : index
    %c0_5 = arith.constant 0 : index
    %6 = vector.load %arg2[%c1_4, %c0_5] : memref<6x128xf32, #tpu.memory_space<vmem>>, vector<1x128xf32>
    %7 = vector.broadcast %5 : vector<8x1xf32> to vector<8x128xf32>
    %8 = vector.broadcast %6 : vector<1x128xf32> to vector<8x128xf32>
    %9 = arith.mulf %7, %8 : vector<8x128xf32>
    %10 = arith.addf %4, %9 : vector<8x128xf32>
    %c0_6 = arith.constant 0 : index
    %c2 = arith.constant 2 : index
    %11 = vector.load %arg1[%c0_6, %c2] : memref<8x6xf32, #tpu.memory_space<vmem>>, vector<8x1xf32>
    %c2_7 = arith.constant 2 : index
    %c0_8 = arith.constant 0 : index
    %12 = vector.load %arg2[%c2_7, %c0_8] : memref<6x128xf32, #tpu.memory_space<vmem>>, vector<1x128xf32>
    %13 = vector.broadcast %11 : vector<8x1xf32> to vector<8x128xf32>
    %14 = vector.broadcast %12 : vector<1x128xf32> to vector<8x128xf32>
    %15 = arith.mulf %13, %14 : vector<8x128xf32>
    %16 = arith.addf %10, %15 : vector<8x128xf32>
    %c0_9 = arith.constant 0 : index
    %c3 = arith.constant 3 : index
    %17 = vector.load %arg1[%c0_9, %c3] : memref<8x6xf32, #tpu.memory_space<vmem>>, vector<8x1xf32>
    %c3_10 = arith.constant 3 : index
    %c0_11 = arith.constant 0 : index
    %18 = vector.load %arg2[%c3_10, %c0_11] : memref<6x128xf32, #tpu.memory_space<vmem>>, vector<1x128xf32>
    %19 = vector.broadcast %17 : vector<8x1xf32> to vector<8x128xf32>
    %20 = vector.broadcast %18 : vector<1x128xf32> to vector<8x128xf32>
    %21 = arith.mulf %19, %20 : vector<8x128xf32>
    %22 = arith.addf %16, %21 : vector<8x128xf32>
    %c0_12 = arith.constant 0 : index
    %c4 = arith.constant 4 : index
    %23 = vector.load %arg1[%c0_12, %c4] : memref<8x6xf32, #tpu.memory_space<vmem>>, vector<8x1xf32>
    %c4_13 = arith.constant 4 : index
    %c0_14 = arith.constant 0 : index
    %24 = vector.load %arg2[%c4_13, %c0_14] : memref<6x128xf32, #tpu.memory_space<vmem>>, vector<1x128xf32>
    %25 = vector.broadcast %23 : vector<8x1xf32> to vector<8x128xf32>
    %26 = vector.broadcast %24 : vector<1x128xf32> to vector<8x128xf32>
    %27 = arith.mulf %25, %26 : vector<8x128xf32>
    %28 = arith.addf %22, %27 : vector<8x128xf32>
    %c0_15 = arith.constant 0 : index
    %c5 = arith.constant 5 : index
    %29 = vector.load %arg1[%c0_15, %c5] : memref<8x6xf32, #tpu.memory_space<vmem>>, vector<8x1xf32>
    %c5_16 = arith.constant 5 : index
    %c0_17 = arith.constant 0 : index
    %30 = vector.load %arg2[%c5_16, %c0_17] : memref<6x128xf32, #tpu.memory_space<vmem>>, vector<1x128xf32>
    %31 = vector.broadcast %29 : vector<8x1xf32> to vector<8x128xf32>
    %32 = vector.broadcast %30 : vector<1x128xf32> to vector<8x128xf32>
    %33 = arith.mulf %31, %32 : vector<8x128xf32>
    %34 = arith.addf %28, %33 : vector<8x128xf32>
    %c0_18 = arith.constant 0 : index
    %c0_19 = arith.constant 0 : index
    %35 = vector.load %arg3[%c0_18, %c0_19] : memref<2x128xf32, #tpu.memory_space<vmem>>, vector<1x128xf32>
    %c1_20 = arith.constant 1 : index
    %c0_21 = arith.constant 0 : index
    %36 = vector.load %arg3[%c1_20, %c0_21] : memref<2x128xf32, #tpu.memory_space<vmem>>, vector<1x128xf32>
    %37 = math.cos %34 : vector<8x128xf32>
    %38 = vector.broadcast %35 : vector<1x128xf32> to vector<8x128xf32>
    %39 = arith.mulf %38, %37 : vector<8x128xf32>
    %40 = math.sin %34 : vector<8x128xf32>
    %41 = vector.broadcast %36 : vector<1x128xf32> to vector<8x128xf32>
    %42 = arith.mulf %41, %40 : vector<8x128xf32>
    %43 = arith.addf %39, %42 : vector<8x128xf32>
    %c0_22 = arith.constant 0 : index
    %c0_23 = arith.constant 0 : index
    %44 = vector.load %arg4[%c0_22, %c0_23] : memref<8x128xf32, #tpu.memory_space<vmem>>, vector<8x128xf32>
    tpu.vector_store %arg4[%c0_22, %c0_23], %43 {strides = array<i32>} : memref<8x128xf32, #tpu.memory_space<vmem>>, vector<8x128xf32>,
    return
  }
  func.func @transform_0(%arg0: i32) -> (i32, i32) {
    %c0_i32 = arith.constant 0 : i32
    %c0_i32_0 = arith.constant 0 : i32
    return %arg0, %c0_i32 : i32, i32
  }
  func.func @transform_1(%arg0: i32) -> (i32, i32) {
    %c0_i32 = arith.constant 0 : i32
    %c0_i32_0 = arith.constant 0 : i32
    %c0_i32_1 = arith.constant 0 : i32
    return %c0_i32, %c0_i32_0 : i32, i32
  }
  func.func @transform_2(%arg0: i32) -> (i32, i32) {
    %c0_i32 = arith.constant 0 : i32
    %c0_i32_0 = arith.constant 0 : i32
    %c0_i32_1 = arith.constant 0 : i32
    return %c0_i32, %c0_i32_0 : i32, i32
  }
  func.func @transform_3(%arg0: i32) -> (i32, i32) {
    %c0_i32 = arith.constant 0 : i32
    %c0_i32_0 = arith.constant 0 : i32
    return %arg0, %c0_i32 : i32, i32
  }
}

</mosaic_0001>

<llo_original>
// kernel: embed_nd.1
$region0: #{embed_nd.1}
  #allocation0 [shape = 'u32[]', space=smem, size = 0x4, offset = 0x4, fixed_abs, tag = 'smem constant byte address 0x4 - core index']
  #allocation1 [shape = 'u32[144,128]{1,0:T(1,128)}', space=vmem, size = 0x12000, scoped, tag = 'internal scratch']
  %s0 = inlined_call_operand.vmem [shape: f32[8,6], index: 0, kind: input, shape index: {}]
  %s1 = inlined_call_operand.vmem [shape: f32[6,128], index: 1, kind: input, shape index: {}]
  %s2 = inlined_call_operand.vmem [shape: f32[2,128], index: 2, kind: input, shape index: {}]
  %s3 = inlined_call_operand.vmem [shape: f32[8,128], index: 3, kind: output, shape index: {}]
  %s4 = sld [smem:[#allocation0]]
  $region22: #{embed_nd.1} parent=0
    _
  %s6 = ssub.s32 1, %s4
  %s7 = scalar_select 0, %s6, %s4
  // Predicated region
  $region2: #{embed_nd.1} parent=0 // pred_check
    _
  $region3: #{embed_nd.1} parent=0 // pred_check_branch
    %9 = sbr.rel (0) target = $region5
  $region4: #{embed_nd.1} parent=0 // pred_region
    _
  $region5: #{embed_nd.1} parent=0 // pred_fallthru
    _
  // Predicated region
  $region6: #{embed_nd.1} parent=0 // pred_check
    _
  $region7: #{embed_nd.1} parent=0 // pred_check_branch
    %11 = sbr.rel (0) target = $region9
  $region8: #{embed_nd.1} parent=0 // pred_region
    _
  $region9: #{embed_nd.1} parent=0 // pred_fallthru
    _
  // Predicated region
  $region10: #{embed_nd.1} parent=0 // pred_check
    _
  $region11: #{embed_nd.1} parent=0 // pred_check_branch
    %13 = sbr.rel (0) target = $region13
  $region12: #{embed_nd.1} parent=0 // pred_region
    _
  $region13: #{embed_nd.1} parent=0 // pred_fallthru
    _
  %v14 = vld [vmem:[%s0] sm:$0xff]
  %v15 = vld [vmem:[%s1] sm:$0x1]
  %17 = vset.pattern.permute.xlu0 0
  %18 = vperm.xlu0 %17, %v14
  %v19 = vpop.permute.xlu0 %18
  %v21 = vlaneseq
  %v22 = vshrl.u32 %v21, 7
  %v23 = vsub.s32 0, %v22
  %v24 = vrot.slane %v15, %v23
  %v25 = vmul.f32 %v19, %v24
  %v26 = vld [vmem:[%s1 + $0x1] sm:$0x1]
  %27 = vset.pattern.permute.xlu0 1
  %28 = vperm.xlu0 %27, %v14
  %v29 = vpop.permute.xlu0 %28
  %v31 = vlaneseq
  %v32 = vshrl.u32 %v31, 7
  %v33 = vsub.s32 0, %v32
  %v34 = vrot.slane %v26, %v33
  %v35 = vmul.f32 %v29, %v34
  %v36 = vadd.f32 %v25, %v35
  %v37 = vld [vmem:[%s1 + $0x2] sm:$0x1]
  %38 = vset.pattern.permute.xlu0 2
  %39 = vperm.xlu0 %38, %v14
  %v40 = vpop.permute.xlu0 %39
  %v42 = vlaneseq
  %v43 = vshrl.u32 %v42, 7
  %v44 = vsub.s32 0, %v43
  %v45 = vrot.slane %v37, %v44
  %v46 = vmul.f32 %v40, %v45
  %v47 = vadd.f32 %v36, %v46
  %v48 = vld [vmem:[%s1 + $0x3] sm:$0x1]
  %49 = vset.pattern.permute.xlu0 3
  %50 = vperm.xlu0 %49, %v14
  %v51 = vpop.permute.xlu0 %50
  %v53 = vlaneseq
  %v54 = vshrl.u32 %v53, 7
  %v55 = vsub.s32 0, %v54
  %v56 = vrot.slane %v48, %v55
  %v57 = vmul.f32 %v51, %v56
  %v58 = vadd.f32 %v47, %v57
  %v59 = vld [vmem:[%s1 + $0x4] sm:$0x1]
  %60 = vset.pattern.permute.xlu0 4
  %61 = vperm.xlu0 %60, %v14
  %v62 = vpop.permute.xlu0 %61
  %v64 = vlaneseq
  %v65 = vshrl.u32 %v64, 7
  %v66 = vsub.s32 0, %v65
  %v67 = vrot.slane %v59, %v66
  %v68 = vmul.f32 %v62, %v67
  %v69 = vadd.f32 %v58, %v68
  %v70 = vld [vmem:[%s1 + $0x5] sm:$0x1]
  %71 = vset.pattern.permute.xlu0 5
  %72 = vperm.xlu0 %71, %v14
  %v73 = vpop.permute.xlu0 %72
  %v75 = vlaneseq
  %v76 = vshrl.u32 %v75, 7
  %v77 = vsub.s32 0, %v76
  %v78 = vrot.slane %v70, %v77
  %v79 = vmul.f32 %v73, %v78
  %v80 = vadd.f32 %v69, %v79
  %v81 = vld [vmem:[%s2] sm:$0x1]
  %v82 = vld [vmem:[%s2 + $0x1] sm:$0x1]
  %v83 = vand.u32 2147483647, %v80
  %vm84 = vcmp.le.f32.partialorder %v83, 0.7853982
  %vm85 = vcmp.lt.s32.totalorder %v80, 0
  %v86 = vand.u32 %v80, 2139095040
  %v87 = vshrl.u32 %v86, 23
  %v88 = vsub.s32 %v87, 127
  %v89 = vand.u32 2147483647, %v80
  %v90 = vand.u32 %v89, 8388607
  %v91 = vor.u32 %v90, 8388608
  %v92 = vsub.s32 0, %v91
  %v93 = vadd.s32 %v88, 1
  %vm94 = vcmp.gt.s32.totalorder %v93, 0
  %v95 = vsel %vm94, %v93, 0
  %v96 = vshrl.u32 %v95, 5
  %v97 = vand.u32 %v95, 31
  %v98 = vsub.s32 32, %v97
  %v99 = vshrl.u32 683565275, %v98
  %v100 = vshll.u32 683565275, %v97
  %v101 = vshrl.u32 2475754826, %v98
  %v102 = vor.u32 %v100, %v101
  %v103 = vshll.u32 2475754826, %v97
  %v104 = vshrl.u32 2131351028, %v98
  %v105 = vor.u32 %v103, %v104
  %v106 = vshll.u32 2131351028, %v97
  %v107 = vshrl.u32 2102212464, %v98
  %v108 = vor.u32 %v106, %v107
  %v109 = vshll.u32 2102212464, %v97
  %v110 = vshrl.u32 920167782, %v98
  %v111 = vor.u32 %v109, %v110
  %v112 = vshll.u32 920167782, %v97
  %v113 = vshrl.u32 1326507024, %v98
  %v114 = vor.u32 %v112, %v113
  %vm115 = vcmp.lt.s32.totalorder %v96, 1
  %vm116 = vcmp.lt.s32.totalorder %v96, 2
  %vm117 = vcmp.lt.s32.totalorder %v96, 3
  %vm118 = vcmp.lt.s32.totalorder %v96, 4
  %v119 = vsel %vm115, %v99, %v102
  %v120 = vsel %vm118, %v108, 2102212464
  %v121 = vsel %vm117, %v105, %v120
  %v122 = vsel %vm116, %v119, %v121
  %v123 = vsel %vm115, %v102, %v105
  %v124 = vsel %vm118, %v111, 920167782
  %v125 = vsel %vm117, %v108, %v124
  %v126 = vsel %vm116, %v123, %v125
  %v127 = vsel %vm115, %v105, %v108
  %v128 = vsel %vm118, %v114, 1326507024
  %v129 = vsel %vm117, %v111, %v128
  %v130 = vsel %vm116, %v127, %v129
  %v131 = vshll.u32 %v91, 8
  %v132 = vmul.u32.u64.compose %v131, %v130
  %v133 = vextract.low.u32 %v132
  %v134 = vextract.high.u32 %v132
  %v135 = vmul.u32.u64.compose %v131, %v126
  %v136 = vextract.low.u32 %v135
  %v137 = vextract.high.u32 %v135
  %v138 = vmul.u32 %v131, %v122
  %v139 = vadd.s32 %v134, %v136
  %vm140 = vc.u32 %v134, %v136
  %v141 = vadd.s32 %v137, 1
  %v142 = vsel %vm140, %v141, %v137
  %v143 = vadd.s32 %v138, %v142
  %v144 = vadd.s32 %v143, 536870912
  %v145 = vshrl.u32 %v144, 30
  %v146 = vshll.u32 %v145, 30
  %v147 = vsub.s32 %v143, %v146
  %vm148 = vcmp.lt.s32.totalorder %v147, 0
  %v149 = vsub.s32 0, %v147
  %v150 = vsel %vm148, %v149, %v147
  %v151 = vclz %v150
  %v152 = vsub.s32 %v151, 2
  %vm153 = vcmp.gt.s32.totalorder 0, %v152
  %v154 = vsel %vm153, 0, %v152
  %v155 = vsub.s32 32, %v154
  %v156 = vshll.u32 %v147, %v154
  %v157 = vshrl.u32 %v139, %v155
  %v158 = vor.u32 %v156, %v157
  %v159 = vsub.s32 4294967266, %v154
  %v160 = vadd.s32 %v159, 127
  %v161 = vshll.u32 %v160, 23
  %v162 = vor.u32 4788187, %v161
  %v163 = vand.u32 2147483647, %v162
  %v165 = vcvt.s32.f32 %v158
  %v166 = vmul.f32 %v165, %v163
  %v167 = vxor.u32 %v166, 2147483648
  %v168 = vsel %vm85, %v167, %v166
  %v169 = vsub.s32 4, %v145
  %v170 = vsel %vm85, %v169, %v145
  %v171 = vsel %vm84, %v80, %v168
  %v172 = vsel %vm84, 0, %v170
  %v173 = vcosq.f32.pop %v171
  %v174 = vsinq.f32.pop %v171
  %vm175 = vweird.f32 %v80
  %v176 = vand.u32 %v172, 3
  %vm177 = vcmp.lt.s32.totalorder %v176, 2
  %vm178 = vcmp.eq.s32.totalorder %v176, 0
  %v179 = vxor.u32 %v174, 2147483648
  %v180 = vsel %vm178, %v173, %v179
  %vm181 = vcmp.eq.s32.totalorder %v176, 2
  %v182 = vxor.u32 %v173, 2147483648
  %v183 = vsel %vm181, %v182, %v174
  %v184 = vsel %vm177, %v180, %v183
  %v185 = vsel %vm175, nan, %v184
  %v186 = vlaneseq
  %v187 = vshrl.u32 %v186, 7
  %v188 = vsub.s32 0, %v187
  %v189 = vrot.slane %v81, %v188
  %v190 = vmul.f32 %v189, %v185
  %v191 = vand.u32 2147483647, %v80
  %vm192 = vcmp.le.f32.partialorder %v191, 0.7853982
  %vm193 = vcmp.lt.s32.totalorder %v80, 0
  %v194 = vand.u32 %v80, 2139095040
  %v195 = vshrl.u32 %v194, 23
  %v196 = vsub.s32 %v195, 127
  %v197 = vand.u32 2147483647, %v80
  %v198 = vand.u32 %v197, 8388607
  %v199 = vor.u32 %v198, 8388608
  %v200 = vsub.s32 0, %v199
  %v201 = vadd.s32 %v196, 1
  %vm202 = vcmp.gt.s32.totalorder %v201, 0
  %v203 = vsel %vm202, %v201, 0
  %v204 = vshrl.u32 %v203, 5
  %v205 = vand.u32 %v203, 31
  %v206 = vsub.s32 32, %v205
  %v207 = vshrl.u32 683565275, %v206
  %v208 = vshll.u32 683565275, %v205
  %v209 = vshrl.u32 2475754826, %v206
  %v210 = vor.u32 %v208, %v209
  %v211 = vshll.u32 2475754826, %v205
  %v212 = vshrl.u32 2131351028, %v206
  %v213 = vor.u32 %v211, %v212
  %v214 = vshll.u32 2131351028, %v205
  %v215 = vshrl.u32 2102212464, %v206
  %v216 = vor.u32 %v214, %v215
  %v217 = vshll.u32 2102212464, %v205
  %v218 = vshrl.u32 920167782, %v206
  %v219 = vor.u32 %v217, %v218
  %v220 = vshll.u32 920167782, %v205
  %v221 = vshrl.u32 1326507024, %v206
  %v222 = vor.u32 %v220, %v221
  %vm223 = vcmp.lt.s32.totalorder %v204, 1
  %vm224 = vcmp.lt.s32.totalorder %v204, 2
  %vm225 = vcmp.lt.s32.totalorder %v204, 3
  %vm226 = vcmp.lt.s32.totalorder %v204, 4
  %v227 = vsel %vm223, %v207, %v210
  %v228 = vsel %vm226, %v216, 2102212464
  %v229 = vsel %vm225, %v213, %v228
  %v230 = vsel %vm224, %v227, %v229
  %v231 = vsel %vm223, %v210, %v213
  %v232 = vsel %vm226, %v219, 920167782
  %v233 = vsel %vm225, %v216, %v232
  %v234 = vsel %vm224, %v231, %v233
  %v235 = vsel %vm223, %v213, %v216
  %v236 = vsel %vm226, %v222, 1326507024
  %v237 = vsel %vm225, %v219, %v236
  %v238 = vsel %vm224, %v235, %v237
  %v239 = vshll.u32 %v199, 8
  %v240 = vmul.u32.u64.compose %v239, %v238
  %v241 = vextract.low.u32 %v240
  %v242 = vextract.high.u32 %v240
  %v243 = vmul.u32.u64.compose %v239, %v234
  %v244 = vextract.low.u32 %v243
  %v245 = vextract.high.u32 %v243
  %v246 = vmul.u32 %v239, %v230
  %v247 = vadd.s32 %v242, %v244
  %vm248 = vc.u32 %v242, %v244
  %v249 = vadd.s32 %v245, 1
  %v250 = vsel %vm248, %v249, %v245
  %v251 = vadd.s32 %v246, %v250
  %v252 = vadd.s32 %v251, 536870912
  %v253 = vshrl.u32 %v252, 30
  %v254 = vshll.u32 %v253, 30
  %v255 = vsub.s32 %v251, %v254
  %vm256 = vcmp.lt.s32.totalorder %v255, 0
  %v257 = vsub.s32 0, %v255
  %v258 = vsel %vm256, %v257, %v255
  %v259 = vclz %v258
  %v260 = vsub.s32 %v259, 2
  %vm261 = vcmp.gt.s32.totalorder 0, %v260
  %v262 = vsel %vm261, 0, %v260
  %v263 = vsub.s32 32, %v262
  %v264 = vshll.u32 %v255, %v262
  %v265 = vshrl.u32 %v247, %v263
  %v266 = vor.u32 %v264, %v265
  %v267 = vsub.s32 4294967266, %v262
  %v268 = vadd.s32 %v267, 127
  %v269 = vshll.u32 %v268, 23
  %v270 = vor.u32 4788187, %v269
  %v271 = vand.u32 2147483647, %v270
  %v273 = vcvt.s32.f32 %v266
  %v274 = vmul.f32 %v273, %v271
  %v275 = vxor.u32 %v274, 2147483648
  %v276 = vsel %vm193, %v275, %v274
  %v277 = vsub.s32 4, %v253
  %v278 = vsel %vm193, %v277, %v253
  %v279 = vsel %vm192, %v80, %v276
  %v280 = vsel %vm192, 0, %v278
  %v281 = vcosq.f32.pop %v279
  %v282 = vsinq.f32.pop %v279
  %vm283 = vweird.f32 %v80
  %v284 = vadd.s32 %v280, 3
  %v285 = vand.u32 %v284, 3
  %vm286 = vcmp.lt.s32.totalorder %v285, 2
  %vm287 = vcmp.eq.s32.totalorder %v285, 0
  %v288 = vxor.u32 %v282, 2147483648
  %v289 = vsel %vm287, %v281, %v288
  %vm290 = vcmp.eq.s32.totalorder %v285, 2
  %v291 = vxor.u32 %v281, 2147483648
  %v292 = vsel %vm290, %v291, %v282
  %v293 = vsel %vm286, %v289, %v292
  %v294 = vsel %vm283, nan, %v293
  %v295 = vlaneseq
  %v296 = vshrl.u32 %v295, 7
  %v297 = vsub.s32 0, %v296
  %v298 = vrot.slane %v82, %v297
  %v299 = vmul.f32 %v298, %v294
  %v300 = vadd.f32 %v190, %v299
  %301 = vst [vmem:[%s3] sm:$0xff] %v300
  // Predicated region
  $region14: #{embed_nd.1} parent=0 // pred_check
    _
  $region15: #{embed_nd.1} parent=0 // pred_check_branch
    %303 = sbr.rel (0) target = $region17
  $region16: #{embed_nd.1} parent=0 // pred_region
    _
  $region17: #{embed_nd.1} parent=0 // pred_fallthru
    _
  // Predicated region
  $region18: #{embed_nd.1} parent=0 // pred_check
    _
  $region19: #{embed_nd.1} parent=0 // pred_check_branch
    %305 = sbr.rel (0) target = $region21
  $region20: #{embed_nd.1} parent=0 // pred_region
    _
  $region21: #{embed_nd.1} parent=0 // pred_fallthru
    _

</llo_original>
